<compile_context>
chip_gen: v7x
topology: tpu7x:2x2x1
jax: 0.10.0
libtpu: 0.0.40
codegen_flags: <defaults>
</compile_context>

<pallas_src>
import jax
import jax.numpy as jnp
from jax.experimental import pallas as pl
from jax.experimental.pallas import tpu as pltpu

LANE = 128


def _round_up(n, m):
    return ((n + m - 1) // m) * m


def _mlp_kernel(x_ref,
                w1_ref, b1_ref,
                w2_ref, b2_ref,
                w3_ref, b3_ref,
                w4_ref, b4_ref,
                out_ref):
    """Fused MLP tile: 4 MXU matmuls with f32 accumulation + ReLU epilogues."""
    wdt = w1_ref.dtype

    h = x_ref[...].astype(wdt)

    # Layer 1: Linear(input_dim, 256) -> ReLU   (BN1 folded into layer-2 params)
    a = jnp.dot(h, w1_ref[...], preferred_element_type=jnp.float32) + b1_ref[...]
    h = jnp.maximum(a, 0.0).astype(wdt)

    # Layer 2: Linear(256, 128) -> ReLU         (BN2 folded into layer-3 params)
    a = jnp.dot(h, w2_ref[...], preferred_element_type=jnp.float32) + b2_ref[...]
    h = jnp.maximum(a, 0.0).astype(wdt)

    # Layer 3: Linear(128, 64 -> padded 128) -> ReLU
    a = jnp.dot(h, w3_ref[...], preferred_element_type=jnp.float32) + b3_ref[...]
    h = jnp.maximum(a, 0.0).astype(wdt)

    # Layer 4: Linear(64->128, num_classes->128); lane-dense store, cast to
    # the (bf16 by default) output dtype to halve HBM writeback.
    out_ref[...] = (jnp.dot(h, w4_ref[...], preferred_element_type=jnp.float32)
                    + b4_ref[...]).astype(out_ref.dtype)


def prepare_params(params, *, weight_dtype=jnp.bfloat16, eps=1e-5):
    """Fold eval-mode BatchNorm into the following Linear and pad to 128 lanes.

    bf16 weights are the default on every generation (f32 accumulation in the
    kernel keeps accuracy; on v5e f32 weights would be MXU-bound).
    """
    s1 = params["bn1_gamma"] / jnp.sqrt(params["bn1_var"] + eps)
    t1 = params["bn1_beta"] - params["bn1_mean"] * s1
    s2 = params["bn2_gamma"] / jnp.sqrt(params["bn2_var"] + eps)
    t2 = params["bn2_beta"] - params["bn2_mean"] * s2

    w1, b1 = params["w1"], params["b1"]
    # Linear(BN(h)) = h @ (s^T * W) + (t @ W + b)  -- exact (BN is affine).
    w2 = params["w2"] * s1.T
    b2 = t1 @ params["w2"] + params["b2"]
    w3 = params["w3"] * s2.T
    b3 = t2 @ params["w3"] + params["b3"]
    w4, b4 = params["w4"], params["b4"]

    # Pad input_dim (w1 rows) to a multiple of 128 so the x tile / layer-1 K is
    # lane-dense. Exact: the matching x columns are zero-padded in the wrapper.
    input_dim = w1.shape[0]
    input_dim_p = _round_up(input_dim, LANE)
    if input_dim_p != input_dim:
        w1 = jnp.pad(w1, ((0, input_dim_p - input_dim), (0, 0)))

    # Zero-pad the 64-wide hidden layer and the classifier output to full
    # 128-lane width (exact: padded activations are relu(0)=0 and the matching
    # w4 rows / output columns are zero).
    num_classes = w4.shape[1]
    h3 = w3.shape[1]
    h3p = _round_up(h3, LANE)
    ncp = _round_up(num_classes, LANE)
    w3 = jnp.pad(w3, ((0, 0), (0, h3p - h3)))
    b3 = jnp.pad(b3, ((0, 0), (0, h3p - h3)))
    w4 = jnp.pad(w4, ((0, h3p - h3), (0, ncp - num_classes)))
    b4 = jnp.pad(b4, ((0, 0), (0, ncp - num_classes)))

    wdt = jnp.dtype(weight_dtype)
    return dict(
        w1=w1.astype(wdt), b1=b1.astype(jnp.float32),
        w2=w2.astype(wdt), b2=b2.astype(jnp.float32),
        w3=w3.astype(wdt), b3=b3.astype(jnp.float32),
        w4=w4.astype(wdt), b4=b4.astype(jnp.float32),
        num_classes=num_classes, input_dim=input_dim,
    )


def face_classifier_forward(x, prepared, *, max_tile_b=1024,
                            out_dtype=jnp.bfloat16, return_padded=False):
    """x: (B, input_dim), f32 or bf16. prepared: output of prepare_params.

    return_padded=True returns the raw (padded_B, 128) out_dtype slab so the
    consumer can fold the slice itself (avoids an extra HBM->HBM copy).
    """
    B, in_dim = x.shape
    input_dim = prepared["input_dim"]
    assert in_dim == input_dim, (in_dim, input_dim)
    input_dim_p = prepared["w1"].shape[0]
    num_classes = prepared["num_classes"]
    out_pad = prepared["w4"].shape[1]

    # Pad feature dim to the lane-dense width of w1 (exact: padded w1 rows are 0).
    if input_dim_p != input_dim:
        x = jnp.pad(x, ((0, 0), (0, input_dim_p - input_dim)))

    # Batch tile: as large as possible (amortize per-step overhead / MXU
    # fill-drain) while keeping >=2 grid steps when B > 128 so v7x's 2
    # TensorCores both get "parallel" work.
    bp0 = _round_up(max(B, 1), LANE)
    tile_b = min(max_tile_b, max(LANE, _round_up(bp0 // 2, LANE)))
    bp = _round_up(max(B, 1), tile_b)
    if bp != B:
        x = jnp.pad(x, ((0, bp - B), (0, 0)))

    weights = (prepared["w1"], prepared["b1"],
               prepared["w2"], prepared["b2"],
               prepared["w3"], prepared["b3"],
               prepared["w4"], prepared["b4"])

    x_spec = pl.BlockSpec((tile_b, input_dim_p), lambda i: (i, 0))
    # Constant index_map => weights/biases stay VMEM-resident across the grid.
    w_specs = [pl.BlockSpec(w.shape, lambda i: (0, 0)) for w in weights]
    out_spec = pl.BlockSpec((tile_b, out_pad), lambda i: (i, 0))

    # Only set an explicit scoped-VMEM limit when the double-buffered footprint
    # would exceed the smallest default limit (v5e: 16 MiB).
    out_itemsize = jnp.dtype(out_dtype).itemsize
    act_bytes = tile_b * (input_dim_p * x.dtype.itemsize + out_pad * out_itemsize)
    w_bytes = sum(int(w.size) * w.dtype.itemsize for w in weights)
    vmem_est = 2 * act_bytes + 2 * w_bytes + (2 << 20)
    cp_kwargs = dict(dimension_semantics=("parallel",))
    if vmem_est > (12 << 20):
        cp_kwargs["vmem_limit_bytes"] = int(min(vmem_est + (4 << 20), 48 << 20))

    out = pl.pallas_call(
        _mlp_kernel,
        out_shape=jax.ShapeDtypeStruct((bp, out_pad), out_dtype),
        grid=(bp // tile_b,),
        in_specs=[x_spec] + w_specs,
        out_specs=out_spec,
        compiler_params=pltpu.CompilerParams(**cp_kwargs),
    )(x, *weights)

    if return_padded:
        return out  # (bp, 128) slab; rows >= B and lanes >= num_classes are junk/zero.
    return out[:B, :num_classes]


def init_params(key, input_dim, num_classes):
    """Deterministic synthetic params (PyTorch layer shapes, random BN stats)."""
    ks = jax.random.split(key, 16)

    def lin(kw, kb, fan_in, fan_out):
        bound = 1.0 / jnp.sqrt(fan_in)
        w = jax.random.uniform(kw, (fan_in, fan_out), jnp.float32, -bound, bound)
        b = jax.random.uniform(kb, (1, fan_out), jnp.float32, -bound, bound)
        return w, b

    w1, b1 = lin(ks[0], ks[1], input_dim, 256)
    w2, b2 = lin(ks[2], ks[3], 256, 128)
    w3, b3 = lin(ks[4], ks[5], 128, 64)
    w4, b4 = lin(ks[6], ks[7], 64, num_classes)

    def bn(kg, kb, km, kv, n):
        gamma = jax.random.uniform(kg, (1, n), jnp.float32, 0.5, 1.5)
        beta = jax.random.uniform(kb, (1, n), jnp.float32, -0.5, 0.5)
        mean = jax.random.uniform(km, (1, n), jnp.float32, -0.5, 0.5)
        var = jax.random.uniform(kv, (1, n), jnp.float32, 0.5, 1.5)
        return gamma, beta, mean, var

    g1, be1, m1, v1 = bn(ks[8], ks[9], ks[10], ks[11], 256)
    g2, be2, m2, v2 = bn(ks[12], ks[13], ks[14], ks[15], 128)

    return dict(w1=w1, b1=b1, w2=w2, b2=b2, w3=w3, b3=b3, w4=w4, b4=b4,
                bn1_gamma=g1, bn1_beta=be1, bn1_mean=m1, bn1_var=v1,
                bn2_gamma=g2, bn2_beta=be2, bn2_mean=m2, bn2_var=v2)


def _reference(x, p, eps=1e-5):
    """Pure-JAX eval-mode reference with explicit (unfolded) BatchNorm."""
    h = jnp.maximum(x @ p["w1"] + p["b1"], 0.0)
    h = (h - p["bn1_mean"]) / jnp.sqrt(p["bn1_var"] + eps) * p["bn1_gamma"] + p["bn1_beta"]
    h = jnp.maximum(h @ p["w2"] + p["b2"], 0.0)
    h = (h - p["bn2_mean"]) / jnp.sqrt(p["bn2_var"] + eps) * p["bn2_gamma"] + p["bn2_beta"]
    h = jnp.maximum(h @ p["w3"] + p["b3"], 0.0)
    return h @ p["w4"] + p["b4"]


if __name__ == "__main__":
    input_dim = 128
    num_classes = 10
    batch = 8

    key = jax.random.PRNGKey(0)
    k_param, k_x = jax.random.split(key)
    params = init_params(k_param, input_dim, num_classes)
    x = jax.random.normal(k_x, (batch, input_dim), jnp.float32)

    expected = _reference(x, params)

    # f32 weights + f32 logits: tight check (exercises the exact BN fold).
    prep_f32 = prepare_params(params, weight_dtype=jnp.float32)
    out_f32 = jax.block_until_ready(
        face_classifier_forward(x, prep_f32, out_dtype=jnp.float32))
    assert out_f32.shape == (batch, num_classes)
    assert jnp.allclose(out_f32, expected, atol=2e-3, rtol=2e-3)

    # Default fast path: bf16 weights + bf16 logits, f32 activations in.
    prep_bf16 = prepare_params(params)
    out_bf16 = jax.block_until_ready(face_classifier_forward(x, prep_bf16))
    assert out_bf16.shape == (batch, num_classes)
    assert out_bf16.dtype == jnp.bfloat16
    assert jnp.allclose(out_bf16.astype(jnp.float32), expected, atol=2e-1, rtol=2e-1)

    # bf16 activations in (halves input HBM traffic when producer emits bf16).
    out_bf16_x = jax.block_until_ready(
        face_classifier_forward(x.astype(jnp.bfloat16), prep_bf16))
    assert out_bf16_x.shape == (batch, num_classes)
    assert jnp.allclose(out_bf16_x.astype(jnp.float32), expected, atol=3e-1, rtol=3e-1)

    # Non-multiple-of-128 input_dim / num_classes exercise both padding paths.
    params2 = init_params(jax.random.PRNGKey(1), 100, 7)
    x2 = jax.random.normal(jax.random.PRNGKey(2), (5, 100), jnp.float32)
    expected2 = _reference(x2, params2)
    prep2 = prepare_params(params2, weight_dtype=jnp.float32)
    out2 = jax.block_until_ready(
        face_classifier_forward(x2, prep2, out_dtype=jnp.float32))
    assert out2.shape == (5, 7)
    assert jnp.allclose(out2, expected2, atol=2e-3, rtol=2e-3)

    print("KERNEL_OK")
</pallas_src>

<mosaic_0001>
module attributes {stable_mosaic.version = 11 : i64} {
  func.func @_mlp_kernel(%arg0: i32, %arg1: memref<128x128xf32, #tpu.memory_space<vmem>>, %arg2: memref<128x256xf32, #tpu.memory_space<vmem>>, %arg3: memref<1x256xf32, #tpu.memory_space<vmem>>, %arg4: memref<256x128xf32, #tpu.memory_space<vmem>>, %arg5: memref<1x128xf32, #tpu.memory_space<vmem>>, %arg6: memref<128x128xf32, #tpu.memory_space<vmem>>, %arg7: memref<1x128xf32, #tpu.memory_space<vmem>>, %arg8: memref<128x128xf32, #tpu.memory_space<vmem>>, %arg9: memref<1x128xf32, #tpu.memory_space<vmem>>, %arg10: memref<128x128xf32, #tpu.memory_space<vmem>>) attributes {dimension_semantics = [#tpu.dimension_semantics<parallel>], iteration_bounds = array<i64: 1>, scalar_prefetch = 0 : i64, scratch_operands = 0 : i64, tpu.core_type = #tpu.core_type<tc>, window_params = [{transform_indices = @transform_0, window_bounds = array<i64: 128, 128>}, {pipeline_mode = #tpu.pipeline_mode<synchronous>, transform_indices = @transform_1, window_bounds = array<i64: 128, 256>}, {pipeline_mode = #tpu.pipeline_mode<synchronous>, transform_indices = @transform_2, window_bounds = array<i64: 1, 256>}, {pipeline_mode = #tpu.pipeline_mode<synchronous>, transform_indices = @transform_3, window_bounds = array<i64: 256, 128>}, {pipeline_mode = #tpu.pipeline_mode<synchronous>, transform_indices = @transform_4, window_bounds = array<i64: 1, 128>}, {pipeline_mode = #tpu.pipeline_mode<synchronous>, transform_indices = @transform_5, window_bounds = array<i64: 128, 128>}, {pipeline_mode = #tpu.pipeline_mode<synchronous>, transform_indices = @transform_6, window_bounds = array<i64: 1, 128>}, {pipeline_mode = #tpu.pipeline_mode<synchronous>, transform_indices = @transform_7, window_bounds = array<i64: 128, 128>}, {pipeline_mode = #tpu.pipeline_mode<synchronous>, transform_indices = @transform_8, window_bounds = array<i64: 1, 128>}, {transform_indices = @transform_9, window_bounds = array<i64: 128, 128>}]} {
    %c0 = arith.constant 0 : index
    %c0_0 = arith.constant 0 : index
    %0 = vector.load %arg1[%c0, %c0_0] : memref<128x128xf32, #tpu.memory_space<vmem>>, vector<128x128xf32>
    %c0_1 = arith.constant 0 : index
    %c0_2 = arith.constant 0 : index
    %1 = vector.load %arg2[%c0_1, %c0_2] : memref<128x256xf32, #tpu.memory_space<vmem>>, vector<128x256xf32>
    %cst = arith.constant dense<0.000000e+00> : vector<128x256xf32>
    %2 = tpu.matmul %0, %1, %cst {dimension_numbers = #tpu.dot_dimension_numbers<[1], [0], [0], [1], [0, 0, 1, 1], [], []>} : vector<128x128xf32>, vector<128x256xf32>, vector<128x256xf32> -> vector<128x256xf32>
    %c0_3 = arith.constant 0 : index
    %c0_4 = arith.constant 0 : index
    %3 = vector.load %arg3[%c0_3, %c0_4] : memref<1x256xf32, #tpu.memory_space<vmem>>, vector<1x256xf32>
    %4 = vector.broadcast %3 : vector<1x256xf32> to vector<128x256xf32>
    %5 = arith.addf %2, %4 : vector<128x256xf32>
    %cst_5 = arith.constant 0.000000e+00 : f32
    %6 = vector.broadcast %cst_5 : f32 to vector<128x256xf32>
    %7 = arith.maximumf %5, %6 : vector<128x256xf32>
    %c0_6 = arith.constant 0 : index
    %c0_7 = arith.constant 0 : index
    %8 = vector.load %arg4[%c0_6, %c0_7] : memref<256x128xf32, #tpu.memory_space<vmem>>, vector<256x128xf32>
    %cst_8 = arith.constant dense<0.000000e+00> : vector<128x128xf32>
    %9 = tpu.matmul %7, %8, %cst_8 {dimension_numbers = #tpu.dot_dimension_numbers<[1], [0], [0], [1], [0, 0, 1, 1], [], []>} : vector<128x256xf32>, vector<256x128xf32>, vector<128x128xf32> -> vector<128x128xf32>
    %c0_9 = arith.constant 0 : index
    %c0_10 = arith.constant 0 : index
    %10 = vector.load %arg5[%c0_9, %c0_10] : memref<1x128xf32, #tpu.memory_space<vmem>>, vector<1x128xf32>
    %11 = vector.broadcast %10 : vector<1x128xf32> to vector<128x128xf32>
    %12 = arith.addf %9, %11 : vector<128x128xf32>
    %cst_11 = arith.constant 0.000000e+00 : f32
    %13 = vector.broadcast %cst_11 : f32 to vector<128x128xf32>
    %14 = arith.maximumf %12, %13 : vector<128x128xf32>
    %c0_12 = arith.constant 0 : index
    %c0_13 = arith.constant 0 : index
    %15 = vector.load %arg6[%c0_12, %c0_13] : memref<128x128xf32, #tpu.memory_space<vmem>>, vector<128x128xf32>
    %cst_14 = arith.constant dense<0.000000e+00> : vector<128x128xf32>
    %16 = tpu.matmul %14, %15, %cst_14 {dimension_numbers = #tpu.dot_dimension_numbers<[1], [0], [0], [1], [0, 0, 1, 1], [], []>} : vector<128x128xf32>, vector<128x128xf32>, vector<128x128xf32> -> vector<128x128xf32>
    %c0_15 = arith.constant 0 : index
    %c0_16 = arith.constant 0 : index
    %17 = vector.load %arg7[%c0_15, %c0_16] : memref<1x128xf32, #tpu.memory_space<vmem>>, vector<1x128xf32>
    %18 = vector.broadcast %17 : vector<1x128xf32> to vector<128x128xf32>
    %19 = arith.addf %16, %18 : vector<128x128xf32>
    %cst_17 = arith.constant 0.000000e+00 : f32
    %20 = vector.broadcast %cst_17 : f32 to vector<128x128xf32>
    %21 = arith.maximumf %19, %20 : vector<128x128xf32>
    %c0_18 = arith.constant 0 : index
    %c0_19 = arith.constant 0 : index
    %22 = vector.load %arg8[%c0_18, %c0_19] : memref<128x128xf32, #tpu.memory_space<vmem>>, vector<128x128xf32>
    %cst_20 = arith.constant dense<0.000000e+00> : vector<128x128xf32>
    %23 = tpu.matmul %21, %22, %cst_20 {dimension_numbers = #tpu.dot_dimension_numbers<[1], [0], [0], [1], [0, 0, 1, 1], [], []>} : vector<128x128xf32>, vector<128x128xf32>, vector<128x128xf32> -> vector<128x128xf32>
    %c0_21 = arith.constant 0 : index
    %c0_22 = arith.constant 0 : index
    %24 = vector.load %arg9[%c0_21, %c0_22] : memref<1x128xf32, #tpu.memory_space<vmem>>, vector<1x128xf32>
    %25 = vector.broadcast %24 : vector<1x128xf32> to vector<128x128xf32>
    %26 = arith.addf %23, %25 : vector<128x128xf32>
    %c0_23 = arith.constant 0 : index
    %c0_24 = arith.constant 0 : index
    %27 = vector.load %arg10[%c0_23, %c0_24] : memref<128x128xf32, #tpu.memory_space<vmem>>, vector<128x128xf32>
    tpu.vector_store %arg10[%c0_23, %c0_24], %26 {strides = array<i32>} : memref<128x128xf32, #tpu.memory_space<vmem>>, vector<128x128xf32>,
    return
  }
  func.func @transform_0(%arg0: i32) -> (i32, i32) {
    %c0_i32 = arith.constant 0 : i32
    %c0_i32_0 = arith.constant 0 : i32
    return %arg0, %c0_i32 : i32, i32
  }
  func.func @transform_1(%arg0: i32) -> (i32, i32) {
    %c0_i32 = arith.constant 0 : i32
    %c0_i32_0 = arith.constant 0 : i32
    %c0_i32_1 = arith.constant 0 : i32
    return %c0_i32, %c0_i32_0 : i32, i32
  }
  func.func @transform_2(%arg0: i32) -> (i32, i32) {
    %c0_i32 = arith.constant 0 : i32
    %c0_i32_0 = arith.constant 0 : i32
    %c0_i32_1 = arith.constant 0 : i32
    return %c0_i32, %c0_i32_0 : i32, i32
  }
  func.func @transform_3(%arg0: i32) -> (i32, i32) {
    %c0_i32 = arith.constant 0 : i32
    %c0_i32_0 = arith.constant 0 : i32
    %c0_i32_1 = arith.constant 0 : i32
    return %c0_i32, %c0_i32_0 : i32, i32
  }
  func.func @transform_4(%arg0: i32) -> (i32, i32) {
    %c0_i32 = arith.constant 0 : i32
    %c0_i32_0 = arith.constant 0 : i32
    %c0_i32_1 = arith.constant 0 : i32
    return %c0_i32, %c0_i32_0 : i32, i32
  }
  func.func @transform_5(%arg0: i32) -> (i32, i32) {
    %c0_i32 = arith.constant 0 : i32
    %c0_i32_0 = arith.constant 0 : i32
    %c0_i32_1 = arith.constant 0 : i32
    return %c0_i32, %c0_i32_0 : i32, i32
  }
  func.func @transform_6(%arg0: i32) -> (i32, i32) {
    %c0_i32 = arith.constant 0 : i32
    %c0_i32_0 = arith.constant 0 : i32
    %c0_i32_1 = arith.constant 0 : i32
    return %c0_i32, %c0_i32_0 : i32, i32
  }
  func.func @transform_7(%arg0: i32) -> (i32, i32) {
    %c0_i32 = arith.constant 0 : i32
    %c0_i32_0 = arith.constant 0 : i32
    %c0_i32_1 = arith.constant 0 : i32
    return %c0_i32, %c0_i32_0 : i32, i32
  }
  func.func @transform_8(%arg0: i32) -> (i32, i32) {
    %c0_i32 = arith.constant 0 : i32
    %c0_i32_0 = arith.constant 0 : i32
    %c0_i32_1 = arith.constant 0 : i32
    return %c0_i32, %c0_i32_0 : i32, i32
  }
  func.func @transform_9(%arg0: i32) -> (i32, i32) {
    %c0_i32 = arith.constant 0 : i32
    %c0_i32_0 = arith.constant 0 : i32
    return %arg0, %c0_i32 : i32, i32
  }
}

</mosaic_0001>

<llo_original>
// kernel: tpu_custom_call.1
$region0: #{tpu_custom_call.1}
  #allocation0 [shape = 'u32[]', space=smem, size = 0x4, offset = 0x4, fixed_abs, tag = 'smem constant byte address 0x4 - core index']
  #allocation1 [shape = 'u32[144,128]{1,0:T(1,128)}', space=vmem, size = 0x12000, scoped, tag = 'internal scratch']
  %s0 = inlined_call_operand.hbm [shape: f32[128,128], index: 0, kind: input, shape index: {}]
  %s1 = inlined_call_operand.hbm [shape: f32[128,256], index: 1, kind: input, shape index: {}]
  %s2 = inlined_call_operand.vmem [shape: f32[1,256], index: 2, kind: input, shape index: {}]
  %s3 = inlined_call_operand.hbm [shape: f32[256,128], index: 3, kind: input, shape index: {}]
  %s4 = inlined_call_operand.vmem [shape: f32[1,128], index: 4, kind: input, shape index: {}]
  %s5 = inlined_call_operand.hbm [shape: f32[128,128], index: 5, kind: input, shape index: {}]
  %s6 = inlined_call_operand.vmem [shape: f32[1,128], index: 6, kind: input, shape index: {}]
  %s7 = inlined_call_operand.hbm [shape: f32[128,128], index: 7, kind: input, shape index: {}]
  %s8 = inlined_call_operand.vmem [shape: f32[1,128], index: 8, kind: input, shape index: {}]
  %s9 = inlined_call_operand.hbm [shape: f32[128,128], index: 9, kind: output, shape index: {}]
  %s10 = sld [smem:[#allocation0]]
  $region66: #{tpu_custom_call.1} parent=0
    _
  %s12 = ssub.s32 1, %s10
  %s13 = scalar_select 0, %s12, %s10
  $region1: #{tpu_custom_call.1} parent=0
    #allocation2 [shape = 'u8[65536]{0}', space=vmem, size = 0x10000, scoped, tag = 'input window, operand 0, single buffered']
    #allocation3 [shape = 's32[1]{0}', space=sflag, size = 0x4, scoped, tag = 'scoped memory for tpu_custom_call.1']
    #allocation4 [shape = 's32[1]{0}', space=sflag, size = 0x4, scoped, tag = 'scoped memory for tpu_custom_call.1']
    #allocation5 [shape = 'u8[131072]{0}', space=vmem, size = 0x20000, scoped, tag = 'input window, operand 1, single buffered']
    #allocation6 [shape = 's32[1]{0}', space=sflag, size = 0x4, scoped, tag = 'scoped memory for tpu_custom_call.1']
    #allocation7 [shape = 'u8[131072]{0}', space=vmem, size = 0x20000, scoped, tag = 'input window, operand 3, single buffered']
    #allocation8 [shape = 'u8[65536]{0}', space=vmem, size = 0x10000, scoped, tag = 'input window, operand 5, single buffered']
    #allocation9 [shape = 's32[1]{0}', space=sflag, size = 0x4, scoped, tag = 'scoped memory for tpu_custom_call.1']
    #allocation10 [shape = 'u8[65536]{0}', space=vmem, size = 0x10000, scoped, tag = 'input window, operand 7, single buffered']
    #allocation11 [shape = 'u8[65536]{0}', space=vmem, size = 0x10000, scoped, tag = 'output window, operand 0, single buffered']
    %14 = vsyncpa [#allocation3], 0
    %15 = vsyncpa [#allocation6], 0
    %16 = vsyncpa [#allocation9], 0
    %17 = vsyncpa [#allocation4], 0
    // Predicated region
    $region2: #{tpu_custom_call.1} parent=1 // pred_check
      _
    $region3: #{tpu_custom_call.1} parent=1 // pred_check_branch
      %19 = sbr.rel (0) target = $region5
    $region4: #{tpu_custom_call.1} parent=1 // pred_region
      %s21 = ssub.s32 2048, 2048
      %22 = vsyncadd [#allocation3], %s21
      %s23 = sshll.u32 [#allocation2], 4
      %s24 = int_to_ptr.vmem [resolvable:$true] %s23
      %29 = dma.hbm_to_vmem [thread:$0]  %s0, 2048, %s24, [#allocation3], 128, 128, 8
    $region5: #{tpu_custom_call.1} parent=1 // pred_fallthru
      _
    // Predicated region
    $region6: #{tpu_custom_call.1} parent=1 // pred_check
      _
    $region7: #{tpu_custom_call.1} parent=1 // pred_check_branch
      %31 = sbr.rel (0) target = $region9
    $region8: #{tpu_custom_call.1} parent=1 // pred_region
      %s33 = ssub.s32 4096, 4096
      %34 = vsyncadd [#allocation6], %s33
      %s35 = sshll.u32 [#allocation5], 4
      %s36 = int_to_ptr.vmem [resolvable:$true] %s35
      %41 = dma.hbm_to_vmem [thread:$0]  %s1, 4096, %s36, [#allocation6], 256, 256, 16
    $region9: #{tpu_custom_call.1} parent=1 // pred_fallthru
      _
    // Predicated region
    $region10: #{tpu_custom_call.1} parent=1 // pred_check
      _
    $region11: #{tpu_custom_call.1} parent=1 // pred_check_branch
      %43 = sbr.rel (0) target = $region13
    $region12: #{tpu_custom_call.1} parent=1 // pred_region
      _
    $region13: #{tpu_custom_call.1} parent=1 // pred_fallthru
      _
    // Predicated region
    $region14: #{tpu_custom_call.1} parent=1 // pred_check
      _
    $region15: #{tpu_custom_call.1} parent=1 // pred_check_branch
      %45 = sbr.rel (0) target = $region17
    $region16: #{tpu_custom_call.1} parent=1 // pred_region
      %s47 = ssub.s32 4096, 4096
      %48 = vsyncadd [#allocation6], %s47
      %s49 = sshll.u32 [#allocation7], 4
      %s50 = int_to_ptr.vmem [resolvable:$true] %s49
      %55 = dma.hbm_to_vmem [thread:$0]  %s3, 4096, %s50, [#allocation6], 128, 128, 8
    $region17: #{tpu_custom_call.1} parent=1 // pred_fallthru
      _
    // Predicated region
    $region18: #{tpu_custom_call.1} parent=1 // pred_check
      _
    $region19: #{tpu_custom_call.1} parent=1 // pred_check_branch
      %57 = sbr.rel (0) target = $region21
    $region20: #{tpu_custom_call.1} parent=1 // pred_region
      _
    $region21: #{tpu_custom_call.1} parent=1 // pred_fallthru
      _
    // Predicated region
    $region22: #{tpu_custom_call.1} parent=1 // pred_check
      _
    $region23: #{tpu_custom_call.1} parent=1 // pred_check_branch
      %59 = sbr.rel (0) target = $region25
    $region24: #{tpu_custom_call.1} parent=1 // pred_region
      %s61 = ssub.s32 2048, 2048
      %62 = vsyncadd [#allocation9], %s61
      %s63 = sshll.u32 [#allocation8], 4
      %s64 = int_to_ptr.vmem [resolvable:$true] %s63
      %69 = dma.hbm_to_vmem [thread:$0]  %s5, 2048, %s64, [#allocation9], 128, 128, 8
    $region25: #{tpu_custom_call.1} parent=1 // pred_fallthru
      _
    // Predicated region
    $region26: #{tpu_custom_call.1} parent=1 // pred_check
      _
    $region27: #{tpu_custom_call.1} parent=1 // pred_check_branch
      %71 = sbr.rel (0) target = $region29
    $region28: #{tpu_custom_call.1} parent=1 // pred_region
      _
    $region29: #{tpu_custom_call.1} parent=1 // pred_fallthru
      _
    // Predicated region
    $region30: #{tpu_custom_call.1} parent=1 // pred_check
      _
    $region31: #{tpu_custom_call.1} parent=1 // pred_check_branch
      %73 = sbr.rel (0) target = $region33
    $region32: #{tpu_custom_call.1} parent=1 // pred_region
      %s75 = ssub.s32 2048, 2048
      %76 = vsyncadd [#allocation9], %s75
      %s77 = sshll.u32 [#allocation10], 4
      %s78 = int_to_ptr.vmem [resolvable:$true] %s77
      %83 = dma.hbm_to_vmem [thread:$0]  %s7, 2048, %s78, [#allocation9], 128, 128, 8
    $region33: #{tpu_custom_call.1} parent=1 // pred_fallthru
      _
    // Predicated region
    $region34: #{tpu_custom_call.1} parent=1 // pred_check
      _
    $region35: #{tpu_custom_call.1} parent=1 // pred_check_branch
      %85 = sbr.rel (0) target = $region37
    $region36: #{tpu_custom_call.1} parent=1 // pred_region
      _
    $region37: #{tpu_custom_call.1} parent=1 // pred_fallthru
      _
    // Predicated region
    $region38: #{tpu_custom_call.1} parent=1 // pred_check
      _
    $region39: #{tpu_custom_call.1} parent=1 // pred_check_branch
      %87 = sbr.rel (0) target = $region41
    $region40: #{tpu_custom_call.1} parent=1 // pred_region
      %88 = dma.done [#allocation3], 2048
    $region41: #{tpu_custom_call.1} parent=1 // pred_fallthru
      _
    // Predicated region
    $region42: #{tpu_custom_call.1} parent=1 // pred_check
      _
    $region43: #{tpu_custom_call.1} parent=1 // pred_check_branch
      %90 = sbr.rel (0) target = $region45
    $region44: #{tpu_custom_call.1} parent=1 // pred_region
      %91 = dma.done [#allocation6], 4096
    $region45: #{tpu_custom_call.1} parent=1 // pred_fallthru
      _
    // Predicated region
    $region46: #{tpu_custom_call.1} parent=1 // pred_check
      _
    $region47: #{tpu_custom_call.1} parent=1 // pred_check_branch
      %93 = sbr.rel (0) target = $region49
    $region48: #{tpu_custom_call.1} parent=1 // pred_region
      %94 = dma.done [#allocation6], 4096
    $region49: #{tpu_custom_call.1} parent=1 // pred_fallthru
      _
    // Predicated region
    $region50: #{tpu_custom_call.1} parent=1 // pred_check
      _
    $region51: #{tpu_custom_call.1} parent=1 // pred_check_branch
      %96 = sbr.rel (0) target = $region53
    $region52: #{tpu_custom_call.1} parent=1 // pred_region
      %97 = dma.done [#allocation9], 2048
    $region53: #{tpu_custom_call.1} parent=1 // pred_fallthru
      _
    // Predicated region
    $region54: #{tpu_custom_call.1} parent=1 // pred_check
      _
    $region55: #{tpu_custom_call.1} parent=1 // pred_check_branch
      %99 = sbr.rel (0) target = $region57
    $region56: #{tpu_custom_call.1} parent=1 // pred_region
      %100 = dma.done [#allocation9], 2048
    $region57: #{tpu_custom_call.1} parent=1 // pred_fallthru
      _
    %v101 = vld [vmem:[#allocation2] sm:$0xff]
    %v102 = vld [vmem:[#allocation2 + $0x8] sm:$0xff]
    %v103 = vld [vmem:[#allocation2 + $0x10] sm:$0xff]
    %v104 = vld [vmem:[#allocation2 + $0x18] sm:$0xff]
    %v105 = vld [vmem:[#allocation2 + $0x20] sm:$0xff]
    %v106 = vld [vmem:[#allocation2 + $0x28] sm:$0xff]
    %v107 = vld [vmem:[#allocation2 + $0x30] sm:$0xff]
    %v108 = vld [vmem:[#allocation2 + $0x38] sm:$0xff]
    %v109 = vld [vmem:[#allocation2 + $0x40] sm:$0xff]
    %v110 = vld [vmem:[#allocation2 + $0x48] sm:$0xff]
    %v111 = vld [vmem:[#allocation2 + $0x50] sm:$0xff]
    %v112 = vld [vmem:[#allocation2 + $0x58] sm:$0xff]
    %v113 = vld [vmem:[#allocation2 + $0x60] sm:$0xff]
    %v114 = vld [vmem:[#allocation2 + $0x68] sm:$0xff]
    %v115 = vld [vmem:[#allocation2 + $0x70] sm:$0xff]
    %v116 = vld [vmem:[#allocation2 + $0x78] sm:$0xff]
    %v117 = vld [vmem:[#allocation5] sm:$0xff]
    %v118 = vld [vmem:[#allocation5 + $0x8] sm:$0xff]
    %v119 = vld [vmem:[#allocation5 + $0x10] sm:$0xff]
    %v120 = vld [vmem:[#allocation5 + $0x18] sm:$0xff]
    %v121 = vld [vmem:[#allocation5 + $0x20] sm:$0xff]
    %v122 = vld [vmem:[#allocation5 + $0x28] sm:$0xff]
    %v123 = vld [vmem:[#allocation5 + $0x30] sm:$0xff]
    %v124 = vld [vmem:[#allocation5 + $0x38] sm:$0xff]
    %v125 = vld [vmem:[#allocation5 + $0x40] sm:$0xff]
    %v126 = vld [vmem:[#allocation5 + $0x48] sm:$0xff]
    %v127 = vld [vmem:[#allocation5 + $0x50] sm:$0xff]
    %v128 = vld [vmem:[#allocation5 + $0x58] sm:$0xff]
    %v129 = vld [vmem:[#allocation5 + $0x60] sm:$0xff]
    %v130 = vld [vmem:[#allocation5 + $0x68] sm:$0xff]
    %v131 = vld [vmem:[#allocation5 + $0x70] sm:$0xff]
    %v132 = vld [vmem:[#allocation5 + $0x78] sm:$0xff]
    %v133 = vld [vmem:[#allocation5 + $0x80] sm:$0xff]
    %v134 = vld [vmem:[#allocation5 + $0x88] sm:$0xff]
    %v135 = vld [vmem:[#allocation5 + $0x90] sm:$0xff]
    %v136 = vld [vmem:[#allocation5 + $0x98] sm:$0xff]
    %v137 = vld [vmem:[#allocation5 + $0xa0] sm:$0xff]
    %v138 = vld [vmem:[#allocation5 + $0xa8] sm:$0xff]
    %v139 = vld [vmem:[#allocation5 + $0xb0] sm:$0xff]
    %v140 = vld [vmem:[#allocation5 + $0xb8] sm:$0xff]
    %v141 = vld [vmem:[#allocation5 + $0xc0] sm:$0xff]
    %v142 = vld [vmem:[#allocation5 + $0xc8] sm:$0xff]
    %v143 = vld [vmem:[#allocation5 + $0xd0] sm:$0xff]
    %v144 = vld [vmem:[#allocation5 + $0xd8] sm:$0xff]
    %v145 = vld [vmem:[#allocation5 + $0xe0] sm:$0xff]
    %v146 = vld [vmem:[#allocation5 + $0xe8] sm:$0xff]
    %v147 = vld [vmem:[#allocation5 + $0xf0] sm:$0xff]
    %v148 = vld [vmem:[#allocation5 + $0xf8] sm:$0xff]
    %v149 = vld [vmem:[%s2] sm:$0x3]
    %v151 = vlaneseq
    %v152 = vshrl.u32 %v151, 7
    %v153 = vsub.s32 0, %v152
    %v154 = vrot.slane %v149, %v153
    %v155 = vlaneseq
    %v156 = vshrl.u32 %v155, 7
    %v157 = vsub.s32 1, %v156
    %v158 = vrot.slane %v149, %v157
    %161 = vmatprep.subr.mxu0 %v118
    %162 = vmatpush1.msra.mxu0 %v117
    %163 = vmatprep.subr.mxu0 %v120
    %164 = vmatpush1.msra.mxu0 %v119
    %165 = vmatprep.subr.mxu0 %v122
    %166 = vmatpush1.msra.mxu0 %v121
    %167 = vmatprep.subr.mxu0 %v124
    %168 = vmatpush1.msra.mxu0 %v123
    %169 = vmatprep.subr.mxu0 %v126
    %170 = vmatpush1.msra.mxu0 %v125
    %171 = vmatprep.subr.mxu0 %v128
    %172 = vmatpush1.msra.mxu0 %v127
    %173 = vmatprep.subr.mxu0 %v130
    %174 = vmatpush1.msra.mxu0 %v129
    %175 = vmatprep.subr.mxu0 %v132
    %176 = vmatpush1.msra.mxu0 %v131
    %177 = vmatprep.subr.mxu0 %v134
    %178 = vmatpush1.msra.mxu0 %v133
    %179 = vmatprep.subr.mxu0 %v136
    %180 = vmatpush1.msra.mxu0 %v135
    %181 = vmatprep.subr.mxu0 %v138
    %182 = vmatpush1.msra.mxu0 %v137
    %183 = vmatprep.subr.mxu0 %v140
    %184 = vmatpush1.msra.mxu0 %v139
    %185 = vmatprep.subr.mxu0 %v142
    %186 = vmatpush1.msra.mxu0 %v141
    %187 = vmatprep.subr.mxu0 %v144
    %188 = vmatpush1.msra.mxu0 %v143
    %189 = vmatprep.subr.mxu0 %v146
    %190 = vmatpush1.msra.mxu0 %v145
    %191 = vmatprep.subr.mxu0 %v148
    %192 = vmatpush1.msra.mxu0 %v147
    %193 = vmatprep.subr.mxu0 0.0
    %194 = vmatpush1.msra.mxu0 0.0
    %195 = vmatprep.subr.mxu0 0.0
    %196 = vmatpush1.msra.mxu0 0.0
    %197 = vmatprep.subr.mxu0 0.0
    %198 = vmatpush1.msra.mxu0 0.0
    %199 = vmatprep.subr.mxu0 0.0
    %200 = vmatpush1.msra.mxu0 0.0
    %201 = vmatprep.subr.mxu0 0.0
    %202 = vmatpush1.msra.mxu0 0.0
    %203 = vmatprep.subr.mxu0 0.0
    %204 = vmatpush1.msra.mxu0 0.0
    %205 = vmatprep.subr.mxu0 0.0
    %206 = vmatpush1.msra.mxu0 0.0
    %207 = vmatprep.subr.mxu0 0.0
    %208 = vmatpush1.msra.mxu0 0.0
    %209 = vmatprep.subr.mxu0 0.0
    %210 = vmatpush1.msra.mxu0 0.0
    %211 = vmatprep.subr.mxu0 0.0
    %212 = vmatpush1.msra.mxu0 0.0
    %213 = vmatprep.subr.mxu0 0.0
    %214 = vmatpush1.msra.mxu0 0.0
    %215 = vmatprep.subr.mxu0 0.0
    %216 = vmatpush1.msra.mxu0 0.0
    %217 = vmatprep.subr.mxu0 0.0
    %218 = vmatpush1.msra.mxu0 0.0
    %219 = vmatprep.subr.mxu0 0.0
    %220 = vmatpush1.msra.mxu0 0.0
    %221 = vmatprep.subr.mxu0 0.0
    %222 = vmatpush1.msra.mxu0 0.0
    %223 = vmatprep.subr.mxu0 0.0
    %224 = vmatpush1.msra.mxu0 0.0
    %225 = vmatprep.mubr.f32.mxu0 0.0
    %226 = vmatmul.mubr.f32.gmra.mrb[0].mxu0 %v101
    %v227 = vpop.f32.mrb[0].mxu0
    %v228 = vadd.f32 %v154, %v227
    %v229 = vpop.f32.mrb[0].mxu0
    %v230 = vadd.f32 %v158, %v229
    %231 = vmatprep.mubr.f32.mxu0 0.0
    %232 = vmatmul.mubr.f32.gmra.mrb[0].mxu0 %v102
    %v233 = vpop.f32.mrb[0].mxu0
    %v234 = vadd.f32 %v154, %v233
    %v235 = vpop.f32.mrb[0].mxu0
    %v236 = vadd.f32 %v158, %v235
    %237 = vmatprep.mubr.f32.mxu0 0.0
    %238 = vmatmul.mubr.f32.gmra.mrb[0].mxu0 %v103
    %v239 = vpop.f32.mrb[0].mxu0
    %v240 = vadd.f32 %v154, %v239
    %v241 = vpop.f32.mrb[0].mxu0
    %v242 = vadd.f32 %v158, %v241
    %243 = vmatprep.mubr.f32.mxu0 0.0
    %244 = vmatmul.mubr.f32.gmra.mrb[0].mxu0 %v104
    %v245 = vpop.f32.mrb[0].mxu0
    %v246 = vadd.f32 %v154, %v245
    %v247 = vpop.f32.mrb[0].mxu0
    %v248 = vadd.f32 %v158, %v247
    %249 = vmatprep.mubr.f32.mxu0 0.0
    %250 = vmatmul.mubr.f32.gmra.mrb[0].mxu0 %v105
    %v251 = vpop.f32.mrb[0].mxu0
    %v252 = vadd.f32 %v154, %v251
    %v253 = vpop.f32.mrb[0].mxu0
    %v254 = vadd.f32 %v158, %v253
    %255 = vmatprep.mubr.f32.mxu0 0.0
    %256 = vmatmul.mubr.f32.gmra.mrb[0].mxu0 %v106
    %v257 = vpop.f32.mrb[0].mxu0
    %v258 = vadd.f32 %v154, %v257
    %v259 = vpop.f32.mrb[0].mxu0
    %v260 = vadd.f32 %v158, %v259
    %261 = vmatprep.mubr.f32.mxu0 0.0
    %262 = vmatmul.mubr.f32.gmra.mrb[0].mxu0 %v107
    %v263 = vpop.f32.mrb[0].mxu0
    %v264 = vadd.f32 %v154, %v263
    %v265 = vpop.f32.mrb[0].mxu0
    %v266 = vadd.f32 %v158, %v265
    %267 = vmatprep.mubr.f32.mxu0 0.0
    %268 = vmatmul.mubr.f32.gmra.mrb[0].mxu0 %v108
    %v269 = vpop.f32.mrb[0].mxu0
    %v270 = vadd.f32 %v154, %v269
    %v271 = vpop.f32.mrb[0].mxu0
    %v272 = vadd.f32 %v158, %v271
    %273 = vmatprep.mubr.f32.mxu0 0.0
    %274 = vmatmul.mubr.f32.gmra.mrb[0].mxu0 %v109
    %v275 = vpop.f32.mrb[0].mxu0
    %v276 = vadd.f32 %v154, %v275
    %v277 = vpop.f32.mrb[0].mxu0
    %v278 = vadd.f32 %v158, %v277
    %279 = vmatprep.mubr.f32.mxu0 0.0
    %280 = vmatmul.mubr.f32.gmra.mrb[0].mxu0 %v110
    %v281 = vpop.f32.mrb[0].mxu0
    %v282 = vadd.f32 %v154, %v281
    %v283 = vpop.f32.mrb[0].mxu0
    %v284 = vadd.f32 %v158, %v283
    %285 = vmatprep.mubr.f32.mxu0 0.0
    %286 = vmatmul.mubr.f32.gmra.mrb[0].mxu0 %v111
    %v287 = vpop.f32.mrb[0].mxu0
    %v288 = vadd.f32 %v154, %v287
    %v289 = vpop.f32.mrb[0].mxu0
    %v290 = vadd.f32 %v158, %v289
    %291 = vmatprep.mubr.f32.mxu0 0.0
    %292 = vmatmul.mubr.f32.gmra.mrb[0].mxu0 %v112
    %v293 = vpop.f32.mrb[0].mxu0
    %v294 = vadd.f32 %v154, %v293
    %v295 = vpop.f32.mrb[0].mxu0
    %v296 = vadd.f32 %v158, %v295
    %297 = vmatprep.mubr.f32.mxu0 0.0
    %298 = vmatmul.mubr.f32.gmra.mrb[0].mxu0 %v113
    %v299 = vpop.f32.mrb[0].mxu0
    %v300 = vadd.f32 %v154, %v299
    %v301 = vpop.f32.mrb[0].mxu0
    %v302 = vadd.f32 %v158, %v301
    %303 = vmatprep.mubr.f32.mxu0 0.0
    %304 = vmatmul.mubr.f32.gmra.mrb[0].mxu0 %v114
    %v305 = vpop.f32.mrb[0].mxu0
    %v306 = vadd.f32 %v154, %v305
    %v307 = vpop.f32.mrb[0].mxu0
    %v308 = vadd.f32 %v158, %v307
    %309 = vmatprep.mubr.f32.mxu0 0.0
    %310 = vmatmul.mubr.f32.gmra.mrb[0].mxu0 %v115
    %v311 = vpop.f32.mrb[0].mxu0
    %v312 = vadd.f32 %v154, %v311
    %v313 = vpop.f32.mrb[0].mxu0
    %v314 = vadd.f32 %v158, %v313
    %315 = vmatprep.mubr.f32.mxu0 0.0
    %316 = vmatmul.mubr.f32.gmra.mrb[0].mxu0 %v116
    %v317 = vpop.f32.mrb[0].mxu0
    %v318 = vadd.f32 %v154, %v317
    %v319 = vpop.f32.mrb[0].mxu0
    %v320 = vadd.f32 %v158, %v319
    %321 = vdwg.mxu0
    %v322 = vmax.f32 %v228, 0.0
    %v323 = vmax.f32 %v230, 0.0
    %v324 = vmax.f32 %v234, 0.0
    %v325 = vmax.f32 %v236, 0.0
    %v326 = vmax.f32 %v240, 0.0
    %v327 = vmax.f32 %v242, 0.0
    %v328 = vmax.f32 %v246, 0.0
    %v329 = vmax.f32 %v248, 0.0
    %v330 = vmax.f32 %v252, 0.0
    %v331 = vmax.f32 %v254, 0.0
    %v332 = vmax.f32 %v258, 0.0
    %v333 = vmax.f32 %v260, 0.0
    %v334 = vmax.f32 %v264, 0.0
    %v335 = vmax.f32 %v266, 0.0
    %v336 = vmax.f32 %v270, 0.0
    %v337 = vmax.f32 %v272, 0.0
    %v338 = vmax.f32 %v276, 0.0
    %v339 = vmax.f32 %v278, 0.0
    %v340 = vmax.f32 %v282, 0.0
    %v341 = vmax.f32 %v284, 0.0
    %v342 = vmax.f32 %v288, 0.0
    %v343 = vmax.f32 %v290, 0.0
    %v344 = vmax.f32 %v294, 0.0
    %v345 = vmax.f32 %v296, 0.0
    %v346 = vmax.f32 %v300, 0.0
    %v347 = vmax.f32 %v302, 0.0
    %v348 = vmax.f32 %v306, 0.0
    %v349 = vmax.f32 %v308, 0.0
    %v350 = vmax.f32 %v312, 0.0
    %v351 = vmax.f32 %v314, 0.0
    %v352 = vmax.f32 %v318, 0.0
    %v353 = vmax.f32 %v320, 0.0
    %v354 = vld [vmem:[#allocation7] sm:$0xff]
    %v355 = vld [vmem:[#allocation7 + $0x8] sm:$0xff]
    %v356 = vld [vmem:[#allocation7 + $0x10] sm:$0xff]
    %v357 = vld [vmem:[#allocation7 + $0x18] sm:$0xff]
    %v358 = vld [vmem:[#allocation7 + $0x20] sm:$0xff]
    %v359 = vld [vmem:[#allocation7 + $0x28] sm:$0xff]
    %v360 = vld [vmem:[#allocation7 + $0x30] sm:$0xff]
    %v361 = vld [vmem:[#allocation7 + $0x38] sm:$0xff]
    %v362 = vld [vmem:[#allocation7 + $0x40] sm:$0xff]
    %v363 = vld [vmem:[#allocation7 + $0x48] sm:$0xff]
    %v364 = vld [vmem:[#allocation7 + $0x50] sm:$0xff]
    %v365 = vld [vmem:[#allocation7 + $0x58] sm:$0xff]
    %v366 = vld [vmem:[#allocation7 + $0x60] sm:$0xff]
    %v367 = vld [vmem:[#allocation7 + $0x68] sm:$0xff]
    %v368 = vld [vmem:[#allocation7 + $0x70] sm:$0xff]
    %v369 = vld [vmem:[#allocation7 + $0x78] sm:$0xff]
    %v370 = vld [vmem:[#allocation7 + $0x80] sm:$0xff]
    %v371 = vld [vmem:[#allocation7 + $0x88] sm:$0xff]
    %v372 = vld [vmem:[#allocation7 + $0x90] sm:$0xff]
    %v373 = vld [vmem:[#allocation7 + $0x98] sm:$0xff]
    %v374 = vld [vmem:[#allocation7 + $0xa0] sm:$0xff]
    %v375 = vld [vmem:[#allocation7 + $0xa8] sm:$0xff]
    %v376 = vld [vmem:[#allocation7 + $0xb0] sm:$0xff]
    %v377 = vld [vmem:[#allocation7 + $0xb8] sm:$0xff]
    %v378 = vld [vmem:[#allocation7 + $0xc0] sm:$0xff]
    %v379 = vld [vmem:[#allocation7 + $0xc8] sm:$0xff]
    %v380 = vld [vmem:[#allocation7 + $0xd0] sm:$0xff]
    %v381 = vld [vmem:[#allocation7 + $0xd8] sm:$0xff]
    %v382 = vld [vmem:[#allocation7 + $0xe0] sm:$0xff]
    %v383 = vld [vmem:[#allocation7 + $0xe8] sm:$0xff]
    %v384 = vld [vmem:[#allocation7 + $0xf0] sm:$0xff]
    %v385 = vld [vmem:[#allocation7 + $0xf8] sm:$0xff]
    %v386 = vld [vmem:[%s4] sm:$0x1]
    %v388 = vlaneseq
    %v389 = vshrl.u32 %v388, 7
    %v390 = vsub.s32 0, %v389
    %v391 = vrot.slane %v386, %v390
    %393 = vmatprep.subr.mxu0 0.0
    %394 = vmatpush1.msra.mxu0 %v354
    %395 = vmatprep.subr.mxu0 0.0
    %396 = vmatpush1.msra.mxu0 %v355
    %397 = vmatprep.subr.mxu0 0.0
    %398 = vmatpush1.msra.mxu0 %v356
    %399 = vmatprep.subr.mxu0 0.0
    %400 = vmatpush1.msra.mxu0 %v357
    %401 = vmatprep.subr.mxu0 0.0
    %402 = vmatpush1.msra.mxu0 %v358
    %403 = vmatprep.subr.mxu0 0.0
    %404 = vmatpush1.msra.mxu0 %v359
    %405 = vmatprep.subr.mxu0 0.0
    %406 = vmatpush1.msra.mxu0 %v360
    %407 = vmatprep.subr.mxu0 0.0
    %408 = vmatpush1.msra.mxu0 %v361
    %409 = vmatprep.subr.mxu0 0.0
    %410 = vmatpush1.msra.mxu0 %v362
    %411 = vmatprep.subr.mxu0 0.0
    %412 = vmatpush1.msra.mxu0 %v363
    %413 = vmatprep.subr.mxu0 0.0
    %414 = vmatpush1.msra.mxu0 %v364
    %415 = vmatprep.subr.mxu0 0.0
    %416 = vmatpush1.msra.mxu0 %v365
    %417 = vmatprep.subr.mxu0 0.0
    %418 = vmatpush1.msra.mxu0 %v366
    %419 = vmatprep.subr.mxu0 0.0
    %420 = vmatpush1.msra.mxu0 %v367
    %421 = vmatprep.subr.mxu0 0.0
    %422 = vmatpush1.msra.mxu0 %v368
    %423 = vmatprep.subr.mxu0 0.0
    %424 = vmatpush1.msra.mxu0 %v369
    %425 = vmatprep.subr.mxu0 0.0
    %426 = vmatpush1.msra.mxu0 %v370
    %427 = vmatprep.subr.mxu0 0.0
    %428 = vmatpush1.msra.mxu0 %v371
    %429 = vmatprep.subr.mxu0 0.0
    %430 = vmatpush1.msra.mxu0 %v372
    %431 = vmatprep.subr.mxu0 0.0
    %432 = vmatpush1.msra.mxu0 %v373
    %433 = vmatprep.subr.mxu0 0.0
    %434 = vmatpush1.msra.mxu0 %v374
    %435 = vmatprep.subr.mxu0 0.0
    %436 = vmatpush1.msra.mxu0 %v375
    %437 = vmatprep.subr.mxu0 0.0
    %438 = vmatpush1.msra.mxu0 %v376
    %439 = vmatprep.subr.mxu0 0.0
    %440 = vmatpush1.msra.mxu0 %v377
    %441 = vmatprep.subr.mxu0 0.0
    %442 = vmatpush1.msra.mxu0 %v378
    %443 = vmatprep.subr.mxu0 0.0
    %444 = vmatpush1.msra.mxu0 %v379
    %445 = vmatprep.subr.mxu0 0.0
    %446 = vmatpush1.msra.mxu0 %v380
    %447 = vmatprep.subr.mxu0 0.0
    %448 = vmatpush1.msra.mxu0 %v381
    %449 = vmatprep.subr.mxu0 0.0
    %450 = vmatpush1.msra.mxu0 %v382
    %451 = vmatprep.subr.mxu0 0.0
    %452 = vmatpush1.msra.mxu0 %v383
    %453 = vmatprep.subr.mxu0 0.0
    %454 = vmatpush1.msra.mxu0 %v384
    %455 = vmatprep.subr.mxu0 0.0
    %456 = vmatpush1.msra.mxu0 %v385
    %457 = vmatprep.mubr.f32.mxu0 %v323
    %458 = vmatmul.mubr.f32.gmra.mrb[0].mxu0 %v322
    %v459 = vpop.f32.mrb[0].mxu0
    %v460 = vadd.f32 %v391, %v459
    %v461 = vpop.f32.mrb[0].mxu0
    %462 = vmatprep.mubr.f32.mxu0 %v325
    %463 = vmatmul.mubr.f32.gmra.mrb[0].mxu0 %v324
    %v464 = vpop.f32.mrb[0].mxu0
    %v465 = vadd.f32 %v391, %v464
    %v466 = vpop.f32.mrb[0].mxu0
    %467 = vmatprep.mubr.f32.mxu0 %v327
    %468 = vmatmul.mubr.f32.gmra.mrb[0].mxu0 %v326
    %v469 = vpop.f32.mrb[0].mxu0
    %v470 = vadd.f32 %v391, %v469
    %v471 = vpop.f32.mrb[0].mxu0
    %472 = vmatprep.mubr.f32.mxu0 %v329
    %473 = vmatmul.mubr.f32.gmra.mrb[0].mxu0 %v328
    %v474 = vpop.f32.mrb[0].mxu0
    %v475 = vadd.f32 %v391, %v474
    %v476 = vpop.f32.mrb[0].mxu0
    %477 = vmatprep.mubr.f32.mxu0 %v331
    %478 = vmatmul.mubr.f32.gmra.mrb[0].mxu0 %v330
    %v479 = vpop.f32.mrb[0].mxu0
    %v480 = vadd.f32 %v391, %v479
    %v481 = vpop.f32.mrb[0].mxu0
    %482 = vmatprep.mubr.f32.mxu0 %v333
    %483 = vmatmul.mubr.f32.gmra.mrb[0].mxu0 %v332
    %v484 = vpop.f32.mrb[0].mxu0
    %v485 = vadd.f32 %v391, %v484
    %v486 = vpop.f32.mrb[0].mxu0
    %487 = vmatprep.mubr.f32.mxu0 %v335
    %488 = vmatmul.mubr.f32.gmra.mrb[0].mxu0 %v334
    %v489 = vpop.f32.mrb[0].mxu0
    %v490 = vadd.f32 %v391, %v489
    %v491 = vpop.f32.mrb[0].mxu0
    %492 = vmatprep.mubr.f32.mxu0 %v337
    %493 = vmatmul.mubr.f32.gmra.mrb[0].mxu0 %v336
    %v494 = vpop.f32.mrb[0].mxu0
    %v495 = vadd.f32 %v391, %v494
    %v496 = vpop.f32.mrb[0].mxu0
    %497 = vmatprep.mubr.f32.mxu0 %v339
    %498 = vmatmul.mubr.f32.gmra.mrb[0].mxu0 %v338
    %v499 = vpop.f32.mrb[0].mxu0
    %v500 = vadd.f32 %v391, %v499
    %v501 = vpop.f32.mrb[0].mxu0
    %502 = vmatprep.mubr.f32.mxu0 %v341
    %503 = vmatmul.mubr.f32.gmra.mrb[0].mxu0 %v340
    %v504 = vpop.f32.mrb[0].mxu0
    %v505 = vadd.f32 %v391, %v504
    %v506 = vpop.f32.mrb[0].mxu0
    %507 = vmatprep.mubr.f32.mxu0 %v343
    %508 = vmatmul.mubr.f32.gmra.mrb[0].mxu0 %v342
    %v509 = vpop.f32.mrb[0].mxu0
    %v510 = vadd.f32 %v391, %v509
    %v511 = vpop.f32.mrb[0].mxu0
    %512 = vmatprep.mubr.f32.mxu0 %v345
    %513 = vmatmul.mubr.f32.gmra.mrb[0].mxu0 %v344
    %v514 = vpop.f32.mrb[0].mxu0
    %v515 = vadd.f32 %v391, %v514
    %v516 = vpop.f32.mrb[0].mxu0
    %517 = vmatprep.mubr.f32.mxu0 %v347
    %518 = vmatmul.mubr.f32.gmra.mrb[0].mxu0 %v346
    %v519 = vpop.f32.mrb[0].mxu0
    %v520 = vadd.f32 %v391, %v519
    %v521 = vpop.f32.mrb[0].mxu0
    %522 = vmatprep.mubr.f32.mxu0 %v349
    %523 = vmatmul.mubr.f32.gmra.mrb[0].mxu0 %v348
    %v524 = vpop.f32.mrb[0].mxu0
    %v525 = vadd.f32 %v391, %v524
    %v526 = vpop.f32.mrb[0].mxu0
    %527 = vmatprep.mubr.f32.mxu0 %v351
    %528 = vmatmul.mubr.f32.gmra.mrb[0].mxu0 %v350
    %v529 = vpop.f32.mrb[0].mxu0
    %v530 = vadd.f32 %v391, %v529
    %v531 = vpop.f32.mrb[0].mxu0
    %532 = vmatprep.mubr.f32.mxu0 %v353
    %533 = vmatmul.mubr.f32.gmra.mrb[0].mxu0 %v352
    %v534 = vpop.f32.mrb[0].mxu0
    %v535 = vadd.f32 %v391, %v534
    %v536 = vpop.f32.mrb[0].mxu0
    %537 = vdwg.mxu0
    %v538 = vmax.f32 %v460, 0.0
    %v539 = vmax.f32 %v465, 0.0
    %v540 = vmax.f32 %v470, 0.0
    %v541 = vmax.f32 %v475, 0.0
    %v542 = vmax.f32 %v480, 0.0
    %v543 = vmax.f32 %v485, 0.0
    %v544 = vmax.f32 %v490, 0.0
    %v545 = vmax.f32 %v495, 0.0
    %v546 = vmax.f32 %v500, 0.0
    %v547 = vmax.f32 %v505, 0.0
    %v548 = vmax.f32 %v510, 0.0
    %v549 = vmax.f32 %v515, 0.0
    %v550 = vmax.f32 %v520, 0.0
    %v551 = vmax.f32 %v525, 0.0
    %v552 = vmax.f32 %v530, 0.0
    %v553 = vmax.f32 %v535, 0.0
    %v554 = vld [vmem:[#allocation8] sm:$0xff]
    %v555 = vld [vmem:[#allocation8 + $0x8] sm:$0xff]
    %v556 = vld [vmem:[#allocation8 + $0x10] sm:$0xff]
    %v557 = vld [vmem:[#allocation8 + $0x18] sm:$0xff]
    %v558 = vld [vmem:[#allocation8 + $0x20] sm:$0xff]
    %v559 = vld [vmem:[#allocation8 + $0x28] sm:$0xff]
    %v560 = vld [vmem:[#allocation8 + $0x30] sm:$0xff]
    %v561 = vld [vmem:[#allocation8 + $0x38] sm:$0xff]
    %v562 = vld [vmem:[#allocation8 + $0x40] sm:$0xff]
    %v563 = vld [vmem:[#allocation8 + $0x48] sm:$0xff]
    %v564 = vld [vmem:[#allocation8 + $0x50] sm:$0xff]
    %v565 = vld [vmem:[#allocation8 + $0x58] sm:$0xff]
    %v566 = vld [vmem:[#allocation8 + $0x60] sm:$0xff]
    %v567 = vld [vmem:[#allocation8 + $0x68] sm:$0xff]
    %v568 = vld [vmem:[#allocation8 + $0x70] sm:$0xff]
    %v569 = vld [vmem:[#allocation8 + $0x78] sm:$0xff]
    %v570 = vld [vmem:[%s6] sm:$0x1]
    %v572 = vlaneseq
    %v573 = vshrl.u32 %v572, 7
    %v574 = vsub.s32 0, %v573
    %v575 = vrot.slane %v570, %v574
    %577 = vmatprep.subr.mxu0 0.0
    %578 = vmatpush1.msra.mxu0 %v554
    %579 = vmatprep.subr.mxu0 0.0
    %580 = vmatpush1.msra.mxu0 %v555
    %581 = vmatprep.subr.mxu0 0.0
    %582 = vmatpush1.msra.mxu0 %v556
    %583 = vmatprep.subr.mxu0 0.0
    %584 = vmatpush1.msra.mxu0 %v557
    %585 = vmatprep.subr.mxu0 0.0
    %586 = vmatpush1.msra.mxu0 %v558
    %587 = vmatprep.subr.mxu0 0.0
    %588 = vmatpush1.msra.mxu0 %v559
    %589 = vmatprep.subr.mxu0 0.0
    %590 = vmatpush1.msra.mxu0 %v560
    %591 = vmatprep.subr.mxu0 0.0
    %592 = vmatpush1.msra.mxu0 %v561
    %593 = vmatprep.subr.mxu0 0.0
    %594 = vmatpush1.msra.mxu0 %v562
    %595 = vmatprep.subr.mxu0 0.0
    %596 = vmatpush1.msra.mxu0 %v563
    %597 = vmatprep.subr.mxu0 0.0
    %598 = vmatpush1.msra.mxu0 %v564
    %599 = vmatprep.subr.mxu0 0.0
    %600 = vmatpush1.msra.mxu0 %v565
    %601 = vmatprep.subr.mxu0 0.0
    %602 = vmatpush1.msra.mxu0 %v566
    %603 = vmatprep.subr.mxu0 0.0
    %604 = vmatpush1.msra.mxu0 %v567
    %605 = vmatprep.subr.mxu0 0.0
    %606 = vmatpush1.msra.mxu0 %v568
    %607 = vmatprep.subr.mxu0 0.0
    %608 = vmatpush1.msra.mxu0 %v569
    %609 = vmatprep.subr.mxu0 0.0
    %610 = vmatpush1.msra.mxu0 0.0
    %611 = vmatprep.subr.mxu0 0.0
    %612 = vmatpush1.msra.mxu0 0.0
    %613 = vmatprep.subr.mxu0 0.0
    %614 = vmatpush1.msra.mxu0 0.0
    %615 = vmatprep.subr.mxu0 0.0
    %616 = vmatpush1.msra.mxu0 0.0
    %617 = vmatprep.subr.mxu0 0.0
    %618 = vmatpush1.msra.mxu0 0.0
    %619 = vmatprep.subr.mxu0 0.0
    %620 = vmatpush1.msra.mxu0 0.0
    %621 = vmatprep.subr.mxu0 0.0
    %622 = vmatpush1.msra.mxu0 0.0
    %623 = vmatprep.subr.mxu0 0.0
    %624 = vmatpush1.msra.mxu0 0.0
    %625 = vmatprep.subr.mxu0 0.0
    %626 = vmatpush1.msra.mxu0 0.0
    %627 = vmatprep.subr.mxu0 0.0
    %628 = vmatpush1.msra.mxu0 0.0
    %629 = vmatprep.subr.mxu0 0.0
    %630 = vmatpush1.msra.mxu0 0.0
    %631 = vmatprep.subr.mxu0 0.0
    %632 = vmatpush1.msra.mxu0 0.0
    %633 = vmatprep.subr.mxu0 0.0
    %634 = vmatpush1.msra.mxu0 0.0
    %635 = vmatprep.subr.mxu0 0.0
    %636 = vmatpush1.msra.mxu0 0.0
    %637 = vmatprep.subr.mxu0 0.0
    %638 = vmatpush1.msra.mxu0 0.0
    %639 = vmatprep.subr.mxu0 0.0
    %640 = vmatpush1.msra.mxu0 0.0
    %641 = vmatprep.mubr.f32.mxu0 0.0
    %642 = vmatmul.mubr.f32.gmra.mrb[0].mxu0 %v538
    %v643 = vpop.f32.mrb[0].mxu0
    %v644 = vadd.f32 %v575, %v643
    %v645 = vpop.f32.mrb[0].mxu0
    %646 = vmatprep.mubr.f32.mxu0 0.0
    %647 = vmatmul.mubr.f32.gmra.mrb[0].mxu0 %v539
    %v648 = vpop.f32.mrb[0].mxu0
    %v649 = vadd.f32 %v575, %v648
    %v650 = vpop.f32.mrb[0].mxu0
    %651 = vmatprep.mubr.f32.mxu0 0.0
    %652 = vmatmul.mubr.f32.gmra.mrb[0].mxu0 %v540
    %v653 = vpop.f32.mrb[0].mxu0
    %v654 = vadd.f32 %v575, %v653
    %v655 = vpop.f32.mrb[0].mxu0
    %656 = vmatprep.mubr.f32.mxu0 0.0
    %657 = vmatmul.mubr.f32.gmra.mrb[0].mxu0 %v541
    %v658 = vpop.f32.mrb[0].mxu0
    %v659 = vadd.f32 %v575, %v658
    %v660 = vpop.f32.mrb[0].mxu0
    %661 = vmatprep.mubr.f32.mxu0 0.0
    %662 = vmatmul.mubr.f32.gmra.mrb[0].mxu0 %v542
    %v663 = vpop.f32.mrb[0].mxu0
    %v664 = vadd.f32 %v575, %v663
    %v665 = vpop.f32.mrb[0].mxu0
    %666 = vmatprep.mubr.f32.mxu0 0.0
    %667 = vmatmul.mubr.f32.gmra.mrb[0].mxu0 %v543
    %v668 = vpop.f32.mrb[0].mxu0
    %v669 = vadd.f32 %v575, %v668
    %v670 = vpop.f32.mrb[0].mxu0
    %671 = vmatprep.mubr.f32.mxu0 0.0
    %672 = vmatmul.mubr.f32.gmra.mrb[0].mxu0 %v544
    %v673 = vpop.f32.mrb[0].mxu0
    %v674 = vadd.f32 %v575, %v673
    %v675 = vpop.f32.mrb[0].mxu0
    %676 = vmatprep.mubr.f32.mxu0 0.0
    %677 = vmatmul.mubr.f32.gmra.mrb[0].mxu0 %v545
    %v678 = vpop.f32.mrb[0].mxu0
    %v679 = vadd.f32 %v575, %v678
    %v680 = vpop.f32.mrb[0].mxu0
    %681 = vmatprep.mubr.f32.mxu0 0.0
    %682 = vmatmul.mubr.f32.gmra.mrb[0].mxu0 %v546
    %v683 = vpop.f32.mrb[0].mxu0
    %v684 = vadd.f32 %v575, %v683
    %v685 = vpop.f32.mrb[0].mxu0
    %686 = vmatprep.mubr.f32.mxu0 0.0
    %687 = vmatmul.mubr.f32.gmra.mrb[0].mxu0 %v547
    %v688 = vpop.f32.mrb[0].mxu0
    %v689 = vadd.f32 %v575, %v688
    %v690 = vpop.f32.mrb[0].mxu0
    %691 = vmatprep.mubr.f32.mxu0 0.0
    %692 = vmatmul.mubr.f32.gmra.mrb[0].mxu0 %v548
    %v693 = vpop.f32.mrb[0].mxu0
    %v694 = vadd.f32 %v575, %v693
    %v695 = vpop.f32.mrb[0].mxu0
    %696 = vmatprep.mubr.f32.mxu0 0.0
    %697 = vmatmul.mubr.f32.gmra.mrb[0].mxu0 %v549
    %v698 = vpop.f32.mrb[0].mxu0
    %v699 = vadd.f32 %v575, %v698
    %v700 = vpop.f32.mrb[0].mxu0
    %701 = vmatprep.mubr.f32.mxu0 0.0
    %702 = vmatmul.mubr.f32.gmra.mrb[0].mxu0 %v550
    %v703 = vpop.f32.mrb[0].mxu0
    %v704 = vadd.f32 %v575, %v703
    %v705 = vpop.f32.mrb[0].mxu0
    %706 = vmatprep.mubr.f32.mxu0 0.0
    %707 = vmatmul.mubr.f32.gmra.mrb[0].mxu0 %v551
    %v708 = vpop.f32.mrb[0].mxu0
    %v709 = vadd.f32 %v575, %v708
    %v710 = vpop.f32.mrb[0].mxu0
    %711 = vmatprep.mubr.f32.mxu0 0.0
    %712 = vmatmul.mubr.f32.gmra.mrb[0].mxu0 %v552
    %v713 = vpop.f32.mrb[0].mxu0
    %v714 = vadd.f32 %v575, %v713
    %v715 = vpop.f32.mrb[0].mxu0
    %716 = vmatprep.mubr.f32.mxu0 0.0
    %717 = vmatmul.mubr.f32.gmra.mrb[0].mxu0 %v553
    %v718 = vpop.f32.mrb[0].mxu0
    %v719 = vadd.f32 %v575, %v718
    %v720 = vpop.f32.mrb[0].mxu0
    %721 = vdwg.mxu0
    %v722 = vmax.f32 %v644, 0.0
    %v723 = vmax.f32 %v649, 0.0
    %v724 = vmax.f32 %v654, 0.0
    %v725 = vmax.f32 %v659, 0.0
    %v726 = vmax.f32 %v664, 0.0
    %v727 = vmax.f32 %v669, 0.0
    %v728 = vmax.f32 %v674, 0.0
    %v729 = vmax.f32 %v679, 0.0
    %v730 = vmax.f32 %v684, 0.0
    %v731 = vmax.f32 %v689, 0.0
    %v732 = vmax.f32 %v694, 0.0
    %v733 = vmax.f32 %v699, 0.0
    %v734 = vmax.f32 %v704, 0.0
    %v735 = vmax.f32 %v709, 0.0
    %v736 = vmax.f32 %v714, 0.0
    %v737 = vmax.f32 %v719, 0.0
    %v738 = vld [vmem:[#allocation10] sm:$0xff]
    %v739 = vld [vmem:[#allocation10 + $0x8] sm:$0xff]
    %v740 = vld [vmem:[#allocation10 + $0x10] sm:$0xff]
    %v741 = vld [vmem:[#allocation10 + $0x18] sm:$0xff]
    %v742 = vld [vmem:[#allocation10 + $0x20] sm:$0xff]
    %v743 = vld [vmem:[#allocation10 + $0x28] sm:$0xff]
    %v744 = vld [vmem:[#allocation10 + $0x30] sm:$0xff]
    %v745 = vld [vmem:[#allocation10 + $0x38] sm:$0xff]
    %v746 = vld [vmem:[#allocation10 + $0x40] sm:$0xff]
    %v747 = vld [vmem:[#allocation10 + $0x48] sm:$0xff]
    %v748 = vld [vmem:[#allocation10 + $0x50] sm:$0xff]
    %v749 = vld [vmem:[#allocation10 + $0x58] sm:$0xff]
    %v750 = vld [vmem:[#allocation10 + $0x60] sm:$0xff]
    %v751 = vld [vmem:[#allocation10 + $0x68] sm:$0xff]
    %v752 = vld [vmem:[#allocation10 + $0x70] sm:$0xff]
    %v753 = vld [vmem:[#allocation10 + $0x78] sm:$0xff]
    %v754 = vld [vmem:[%s8] sm:$0x1]
    %v756 = vlaneseq
    %v757 = vshrl.u32 %v756, 7
    %v758 = vsub.s32 0, %v757
    %v759 = vrot.slane %v754, %v758
    %761 = vmatprep.subr.mxu0 0.0
    %762 = vmatpush1.msra.mxu0 %v738
    %763 = vmatprep.subr.mxu0 0.0
    %764 = vmatpush1.msra.mxu0 %v739
    %765 = vmatprep.subr.mxu0 0.0
    %766 = vmatpush1.msra.mxu0 %v740
    %767 = vmatprep.subr.mxu0 0.0
    %768 = vmatpush1.msra.mxu0 %v741
    %769 = vmatprep.subr.mxu0 0.0
    %770 = vmatpush1.msra.mxu0 %v742
    %771 = vmatprep.subr.mxu0 0.0
    %772 = vmatpush1.msra.mxu0 %v743
    %773 = vmatprep.subr.mxu0 0.0
    %774 = vmatpush1.msra.mxu0 %v744
    %775 = vmatprep.subr.mxu0 0.0
    %776 = vmatpush1.msra.mxu0 %v745
    %777 = vmatprep.subr.mxu0 0.0
    %778 = vmatpush1.msra.mxu0 %v746
    %779 = vmatprep.subr.mxu0 0.0
    %780 = vmatpush1.msra.mxu0 %v747
    %781 = vmatprep.subr.mxu0 0.0
    %782 = vmatpush1.msra.mxu0 %v748
    %783 = vmatprep.subr.mxu0 0.0
    %784 = vmatpush1.msra.mxu0 %v749
    %785 = vmatprep.subr.mxu0 0.0
    %786 = vmatpush1.msra.mxu0 %v750
    %787 = vmatprep.subr.mxu0 0.0
    %788 = vmatpush1.msra.mxu0 %v751
    %789 = vmatprep.subr.mxu0 0.0
    %790 = vmatpush1.msra.mxu0 %v752
    %791 = vmatprep.subr.mxu0 0.0
    %792 = vmatpush1.msra.mxu0 %v753
    %793 = vmatprep.subr.mxu0 0.0
    %794 = vmatpush1.msra.mxu0 0.0
    %795 = vmatprep.subr.mxu0 0.0
    %796 = vmatpush1.msra.mxu0 0.0
    %797 = vmatprep.subr.mxu0 0.0
    %798 = vmatpush1.msra.mxu0 0.0
    %799 = vmatprep.subr.mxu0 0.0
    %800 = vmatpush1.msra.mxu0 0.0
    %801 = vmatprep.subr.mxu0 0.0
    %802 = vmatpush1.msra.mxu0 0.0
    %803 = vmatprep.subr.mxu0 0.0
    %804 = vmatpush1.msra.mxu0 0.0
    %805 = vmatprep.subr.mxu0 0.0
    %806 = vmatpush1.msra.mxu0 0.0
    %807 = vmatprep.subr.mxu0 0.0
    %808 = vmatpush1.msra.mxu0 0.0
    %809 = vmatprep.subr.mxu0 0.0
    %810 = vmatpush1.msra.mxu0 0.0
    %811 = vmatprep.subr.mxu0 0.0
    %812 = vmatpush1.msra.mxu0 0.0
    %813 = vmatprep.subr.mxu0 0.0
    %814 = vmatpush1.msra.mxu0 0.0
    %815 = vmatprep.subr.mxu0 0.0
    %816 = vmatpush1.msra.mxu0 0.0
    %817 = vmatprep.subr.mxu0 0.0
    %818 = vmatpush1.msra.mxu0 0.0
    %819 = vmatprep.subr.mxu0 0.0
    %820 = vmatpush1.msra.mxu0 0.0
    %821 = vmatprep.subr.mxu0 0.0
    %822 = vmatpush1.msra.mxu0 0.0
    %823 = vmatprep.subr.mxu0 0.0
    %824 = vmatpush1.msra.mxu0 0.0
    %825 = vmatprep.mubr.f32.mxu0 0.0
    %826 = vmatmul.mubr.f32.gmra.mrb[0].mxu0 %v722
    %v827 = vpop.f32.mrb[0].mxu0
    %v828 = vadd.f32 %v759, %v827
    %v829 = vpop.f32.mrb[0].mxu0
    %830 = vmatprep.mubr.f32.mxu0 0.0
    %831 = vmatmul.mubr.f32.gmra.mrb[0].mxu0 %v723
    %v832 = vpop.f32.mrb[0].mxu0
    %v833 = vadd.f32 %v759, %v832
    %v834 = vpop.f32.mrb[0].mxu0
    %835 = vmatprep.mubr.f32.mxu0 0.0
    %836 = vmatmul.mubr.f32.gmra.mrb[0].mxu0 %v724
    %v837 = vpop.f32.mrb[0].mxu0
    %v838 = vadd.f32 %v759, %v837
    %v839 = vpop.f32.mrb[0].mxu0
    %840 = vmatprep.mubr.f32.mxu0 0.0
    %841 = vmatmul.mubr.f32.gmra.mrb[0].mxu0 %v725
    %v842 = vpop.f32.mrb[0].mxu0
    %v843 = vadd.f32 %v759, %v842
    %v844 = vpop.f32.mrb[0].mxu0
    %845 = vmatprep.mubr.f32.mxu0 0.0
    %846 = vmatmul.mubr.f32.gmra.mrb[0].mxu0 %v726
    %v847 = vpop.f32.mrb[0].mxu0
    %v848 = vadd.f32 %v759, %v847
    %v849 = vpop.f32.mrb[0].mxu0
    %850 = vmatprep.mubr.f32.mxu0 0.0
    %851 = vmatmul.mubr.f32.gmra.mrb[0].mxu0 %v727
    %v852 = vpop.f32.mrb[0].mxu0
    %v853 = vadd.f32 %v759, %v852
    %v854 = vpop.f32.mrb[0].mxu0
    %855 = vmatprep.mubr.f32.mxu0 0.0
    %856 = vmatmul.mubr.f32.gmra.mrb[0].mxu0 %v728
    %v857 = vpop.f32.mrb[0].mxu0
    %v858 = vadd.f32 %v759, %v857
    %v859 = vpop.f32.mrb[0].mxu0
    %860 = vmatprep.mubr.f32.mxu0 0.0
    %861 = vmatmul.mubr.f32.gmra.mrb[0].mxu0 %v729
    %v862 = vpop.f32.mrb[0].mxu0
    %v863 = vadd.f32 %v759, %v862
    %v864 = vpop.f32.mrb[0].mxu0
    %865 = vmatprep.mubr.f32.mxu0 0.0
    %866 = vmatmul.mubr.f32.gmra.mrb[0].mxu0 %v730
    %v867 = vpop.f32.mrb[0].mxu0
    %v868 = vadd.f32 %v759, %v867
    %v869 = vpop.f32.mrb[0].mxu0
    %870 = vmatprep.mubr.f32.mxu0 0.0
    %871 = vmatmul.mubr.f32.gmra.mrb[0].mxu0 %v731
    %v872 = vpop.f32.mrb[0].mxu0
    %v873 = vadd.f32 %v759, %v872
    %v874 = vpop.f32.mrb[0].mxu0
    %875 = vmatprep.mubr.f32.mxu0 0.0
    %876 = vmatmul.mubr.f32.gmra.mrb[0].mxu0 %v732
    %v877 = vpop.f32.mrb[0].mxu0
    %v878 = vadd.f32 %v759, %v877
    %v879 = vpop.f32.mrb[0].mxu0
    %880 = vmatprep.mubr.f32.mxu0 0.0
    %881 = vmatmul.mubr.f32.gmra.mrb[0].mxu0 %v733
    %v882 = vpop.f32.mrb[0].mxu0
    %v883 = vadd.f32 %v759, %v882
    %v884 = vpop.f32.mrb[0].mxu0
    %885 = vmatprep.mubr.f32.mxu0 0.0
    %886 = vmatmul.mubr.f32.gmra.mrb[0].mxu0 %v734
    %v887 = vpop.f32.mrb[0].mxu0
    %v888 = vadd.f32 %v759, %v887
    %v889 = vpop.f32.mrb[0].mxu0
    %890 = vmatprep.mubr.f32.mxu0 0.0
    %891 = vmatmul.mubr.f32.gmra.mrb[0].mxu0 %v735
    %v892 = vpop.f32.mrb[0].mxu0
    %v893 = vadd.f32 %v759, %v892
    %v894 = vpop.f32.mrb[0].mxu0
    %895 = vmatprep.mubr.f32.mxu0 0.0
    %896 = vmatmul.mubr.f32.gmra.mrb[0].mxu0 %v736
    %v897 = vpop.f32.mrb[0].mxu0
    %v898 = vadd.f32 %v759, %v897
    %v899 = vpop.f32.mrb[0].mxu0
    %900 = vmatprep.mubr.f32.mxu0 0.0
    %901 = vmatmul.mubr.f32.gmra.mrb[0].mxu0 %v737
    %v902 = vpop.f32.mrb[0].mxu0
    %v903 = vadd.f32 %v759, %v902
    %v904 = vpop.f32.mrb[0].mxu0
    %905 = vdwg.mxu0
    %906 = vst [vmem:[#allocation11] sm:$0xff] %v828
    %907 = vst [vmem:[#allocation11 + $0x8] sm:$0xff] %v833
    %908 = vst [vmem:[#allocation11 + $0x10] sm:$0xff] %v838
    %909 = vst [vmem:[#allocation11 + $0x18] sm:$0xff] %v843
    %910 = vst [vmem:[#allocation11 + $0x20] sm:$0xff] %v848
    %911 = vst [vmem:[#allocation11 + $0x28] sm:$0xff] %v853
    %912 = vst [vmem:[#allocation11 + $0x30] sm:$0xff] %v858
    %913 = vst [vmem:[#allocation11 + $0x38] sm:$0xff] %v863
    %914 = vst [vmem:[#allocation11 + $0x40] sm:$0xff] %v868
    %915 = vst [vmem:[#allocation11 + $0x48] sm:$0xff] %v873
    %916 = vst [vmem:[#allocation11 + $0x50] sm:$0xff] %v878
    %917 = vst [vmem:[#allocation11 + $0x58] sm:$0xff] %v883
    %918 = vst [vmem:[#allocation11 + $0x60] sm:$0xff] %v888
    %919 = vst [vmem:[#allocation11 + $0x68] sm:$0xff] %v893
    %920 = vst [vmem:[#allocation11 + $0x70] sm:$0xff] %v898
    %921 = vst [vmem:[#allocation11 + $0x78] sm:$0xff] %v903
    // Predicated region
    $region58: #{tpu_custom_call.1} parent=1 // pred_check
      _
    $region59: #{tpu_custom_call.1} parent=1 // pred_check_branch
      %923 = sbr.rel (0) target = $region61
    $region60: #{tpu_custom_call.1} parent=1 // pred_region
      %s925 = ssub.s32 2048, 2048
      %926 = vsyncadd [#allocation4], %s925
      %s927 = sshll.u32 [#allocation11], 4
      %s928 = int_to_ptr.vmem [resolvable:$true] %s927
      %933 = dma.vmem_to_hbm [thread:$0]  %s928, 2048, %s9, [#allocation4], 128, 128, 8
    $region61: #{tpu_custom_call.1} parent=1 // pred_fallthru
      _
    // Predicated region
    $region62: #{tpu_custom_call.1} parent=1 // pred_check
      _
    $region63: #{tpu_custom_call.1} parent=1 // pred_check_branch
      %935 = sbr.rel (0) target = $region65
    $region64: #{tpu_custom_call.1} parent=1 // pred_region
      %936 = dma.done [#allocation4], 2048
    $region65: #{tpu_custom_call.1} parent=1 // pred_fallthru
      _
    %937 = vsyncpa [#allocation3], 1
    %938 = vsyncpa [#allocation6], 1
    %939 = vsyncpa [#allocation9], 1
    %940 = vsyncpa [#allocation4], 1

</llo_original>
